<compile_context>
chip_gen: v6e
topology: v6e:2x2x1
jax: 0.10.0
libtpu: 0.0.40
codegen_flags: <defaults>
</compile_context>

<pallas_src>
import numpy as np
import jax
import jax.numpy as jnp
from jax.experimental import pallas as pl
from jax.experimental.pallas import tpu as pltpu


def _pick_bt(B, target=8):
    """Largest Bt <= target dividing B, preferring >= 2 grid steps (v7x megacore)."""
    divisors = [d for d in range(1, min(target, B) + 1) if B % d == 0]
    good = [d for d in divisors if B // d >= 2]
    return max(good) if good else max(divisors)


# ----------------------------------------------------------------------------
# Fused depthwise-3x3 + pointwise-1x1 kernel (Bt batch elements per grid step)
# ----------------------------------------------------------------------------
def make_dwconv_kernel(Bt, C, O, H, W):
    HW = H * W
    # Static lane-roll amount per tap t=(kh*3+kw): rolled[p] = x[(p + dh*W + dw) mod HW]
    shifts = [(-((t // 3 - 1) * W + (t % 3 - 1))) % HW for t in range(9)]

    def kernel(x_ref, wdm_ref, wpT_ref, bf_ref, o_ref):
        # x_ref  : (Bt, C, H*W)  channel-major input block
        # wdm_ref: (9, C, H*W)   depthwise weights with zero-padding masks folded in
        # wpT_ref: (O, C)        pointwise weights, pre-transposed
        # bf_ref : (O, 1)        fused bias  (wp.T @ bd + bp)
        # o_ref  : (Bt, O, H*W)  channel-major output block (lane-dense store)
        wpT = wpT_ref[...]
        bfull = jnp.broadcast_to(bf_ref[...], (O, HW))   # hoisted lane broadcast

        for b in range(Bt):
            xb = x_ref[b]                                # (C, HW)
            acc = xb * wdm_ref[4]                        # center tap, no shift
            for t in range(9):
                if t == 4:
                    continue
                rolled = pltpu.roll(xb, shift=shifts[t], axis=1)   # XLU lane rotate
                acc = acc + rolled * wdm_ref[t]
            # pointwise 1x1 conv == (O,C) @ (C,HW) on the MXU, stores straight out
            y = jnp.dot(wpT, acc, preferred_element_type=jnp.float32) + bfull
            o_ref[b] = y

    return kernel


# ----------------------------------------------------------------------------
# Wrapper: NCHW in, NCHW out (matches the PyTorch module's forward)
# ----------------------------------------------------------------------------
@jax.jit
def depthwise_conv_forward(x_nchw, wd, bd, wp, bp):
    # x_nchw: (B, C, H, W)   wd: (3, 3, C)   bd: (C,)   wp: (C, O)   bp: (O,)
    B, C, H, W = x_nchw.shape
    O = wp.shape[1]
    HW = H * W

    # NCHW is already channel-major: (B, C, H*W) is a free contiguous reshape.
    x_f = x_nchw.reshape(B, C, HW)

    # Zero-padding boundary masks (static numpy, compile-time constants) folded
    # into the depthwise weights, so the kernel needs no padding scratch/where.
    hh = np.arange(H)[:, None]
    ww = np.arange(W)[None, :]
    mask = np.empty((9, HW), np.float32)
    for t in range(9):
        dh, dw = t // 3 - 1, t % 3 - 1
        m = (hh + dh >= 0) & (hh + dh < H) & (ww + dw >= 0) & (ww + dw < W)
        mask[t] = m.reshape(HW).astype(np.float32)
    wdm = wd.reshape(9, C)[:, :, None] * jnp.asarray(mask)[:, None, :]   # (9,C,HW)

    wpT = wp.T                                       # (O, C)
    bf = (wpT @ bd + bp).reshape(O, 1)               # fused depthwise+pointwise bias

    Bt = _pick_bt(B)

    out = pl.pallas_call(
        make_dwconv_kernel(Bt, C, O, H, W),
        out_shape=jax.ShapeDtypeStruct((B, O, HW), jnp.float32),
        grid_spec=pltpu.PrefetchScalarGridSpec(
            num_scalar_prefetch=0,
            grid=(B // Bt,),
            in_specs=[
                pl.BlockSpec((Bt, C, HW), lambda i: (i, 0, 0)),
                pl.BlockSpec((9, C, HW), lambda i: (0, 0, 0)),
                pl.BlockSpec((O, C), lambda i: (0, 0)),
                pl.BlockSpec((O, 1), lambda i: (0, 0)),
            ],
            out_specs=pl.BlockSpec((Bt, O, HW), lambda i: (i, 0, 0)),
        ),
        compiler_params=pltpu.CompilerParams(
            dimension_semantics=("parallel",)),
    )(x_f, wdm, wpT, bf)

    return out.reshape(B, O, H, W)   # NCHW, free reshape


# ----------------------------------------------------------------------------
# Pure-JAX reference (lax conv) for correctness checking
# ----------------------------------------------------------------------------
def reference_forward(x_nchw, wd, bd, wp, bp):
    B, C, H, W = x_nchw.shape
    O = wp.shape[1]
    hi = jax.lax.Precision.HIGHEST
    w_oihw = jnp.transpose(wd, (2, 0, 1))[:, None]            # (C, 1, 3, 3)
    y = jax.lax.conv_general_dilated(
        x_nchw, w_oihw, (1, 1), [(1, 1), (1, 1)],
        feature_group_count=C,
        dimension_numbers=('NCHW', 'OIHW', 'NCHW'), precision=hi)
    y = y + bd.reshape(1, C, 1, 1)
    y = jnp.einsum('bchw,co->bohw', y, wp, precision=hi) + bp.reshape(1, O, 1, 1)
    return y


if __name__ == "__main__":
    B, C, O, H, W = 2, 16, 32, 16, 16
    key = jax.random.PRNGKey(0)
    kx, k1, k2, k3, k4 = jax.random.split(key, 5)
    x = jax.random.normal(kx, (B, C, H, W), dtype=jnp.float32)
    wd = 0.1 * jax.random.normal(k1, (3, 3, C), dtype=jnp.float32)  # depth_conv.weight (c,0,kh,kw) -> (kh,kw,c)
    bd = 0.1 * jax.random.normal(k2, (C,), dtype=jnp.float32)       # depth_conv.bias
    wp = 0.1 * jax.random.normal(k3, (C, O), dtype=jnp.float32)     # point_conv.weight (o,c,1,1) -> (c,o)
    bp = 0.1 * jax.random.normal(k4, (O,), dtype=jnp.float32)       # point_conv.bias

    out = jax.block_until_ready(depthwise_conv_forward(x, wd, bd, wp, bp))
    assert out.shape == (B, O, H, W)

    want = jax.block_until_ready(reference_forward(x, wd, bd, wp, bp))
    err = float(jnp.max(jnp.abs(out - want)))
    assert err < 2e-3, f"max abs diff {err}"

    print("KERNEL_OK")
</pallas_src>

<mosaic_0001>
module attributes {stable_mosaic.version = 11 : i64} {
  func.func @kernel(%arg0: i32, %arg1: memref<1x16x256xf32, #tpu.memory_space<vmem>>, %arg2: memref<9x16x256xf32, #tpu.memory_space<vmem>>, %arg3: memref<32x16xf32, #tpu.memory_space<vmem>>, %arg4: memref<32x1xf32, #tpu.memory_space<vmem>>, %arg5: memref<1x32x256xf32, #tpu.memory_space<vmem>>) attributes {dimension_semantics = [#tpu.dimension_semantics<parallel>], iteration_bounds = array<i64: 2>, scalar_prefetch = 0 : i64, scratch_operands = 0 : i64, tpu.core_type = #tpu.core_type<tc>, window_params = [{transform_indices = @transform_0, window_bounds = array<i64: 1, 16, 256>}, {pipeline_mode = #tpu.pipeline_mode<synchronous>, transform_indices = @transform_1, window_bounds = array<i64: 9, 16, 256>}, {pipeline_mode = #tpu.pipeline_mode<synchronous>, transform_indices = @transform_2, window_bounds = array<i64: 32, 16>}, {pipeline_mode = #tpu.pipeline_mode<synchronous>, transform_indices = @transform_3, window_bounds = array<i64: 32, 1>}, {transform_indices = @transform_4, window_bounds = array<i64: 1, 32, 256>}]} {
    %c0 = arith.constant 0 : index
    %c0_0 = arith.constant 0 : index
    %0 = vector.load %arg3[%c0, %c0_0] : memref<32x16xf32, #tpu.memory_space<vmem>>, vector<32x16xf32>
    %c0_1 = arith.constant 0 : index
    %c0_2 = arith.constant 0 : index
    %1 = vector.load %arg4[%c0_1, %c0_2] : memref<32x1xf32, #tpu.memory_space<vmem>>, vector<32x1xf32>
    %2 = vector.shape_cast %1 : vector<32x1xf32> to vector<32x1xf32>
    %3 = vector.broadcast %2 : vector<32x1xf32> to vector<32x256xf32>
    %c0_3 = arith.constant 0 : index
    %c0_4 = arith.constant 0 : index
    %c0_5 = arith.constant 0 : index
    %4 = vector.load %arg1[%c0_3, %c0_4, %c0_5] : memref<1x16x256xf32, #tpu.memory_space<vmem>>, vector<1x16x256xf32>
    %5 = vector.shape_cast %4 : vector<1x16x256xf32> to vector<16x256xf32>
    %c4 = arith.constant 4 : index
    %c0_6 = arith.constant 0 : index
    %c0_7 = arith.constant 0 : index
    %6 = vector.load %arg2[%c4, %c0_6, %c0_7] : memref<9x16x256xf32, #tpu.memory_space<vmem>>, vector<1x16x256xf32>
    %7 = vector.shape_cast %6 : vector<1x16x256xf32> to vector<16x256xf32>
    %8 = arith.mulf %5, %7 : vector<16x256xf32>
    %c17_i32 = arith.constant 17 : i32
    %9 = tpu.dynamic_rotate %5 by %c17_i32 dim 1 : vector<16x256xf32>, i32 -> vector<16x256xf32>
    %c0_8 = arith.constant 0 : index
    %c0_9 = arith.constant 0 : index
    %c0_10 = arith.constant 0 : index
    %10 = vector.load %arg2[%c0_8, %c0_9, %c0_10] : memref<9x16x256xf32, #tpu.memory_space<vmem>>, vector<1x16x256xf32>
    %11 = vector.shape_cast %10 : vector<1x16x256xf32> to vector<16x256xf32>
    %12 = arith.mulf %9, %11 : vector<16x256xf32>
    %13 = arith.addf %8, %12 : vector<16x256xf32>
    %c16_i32 = arith.constant 16 : i32
    %14 = tpu.dynamic_rotate %5 by %c16_i32 dim 1 : vector<16x256xf32>, i32 -> vector<16x256xf32>
    %c1 = arith.constant 1 : index
    %c0_11 = arith.constant 0 : index
    %c0_12 = arith.constant 0 : index
    %15 = vector.load %arg2[%c1, %c0_11, %c0_12] : memref<9x16x256xf32, #tpu.memory_space<vmem>>, vector<1x16x256xf32>
    %16 = vector.shape_cast %15 : vector<1x16x256xf32> to vector<16x256xf32>
    %17 = arith.mulf %14, %16 : vector<16x256xf32>
    %18 = arith.addf %13, %17 : vector<16x256xf32>
    %c15_i32 = arith.constant 15 : i32
    %19 = tpu.dynamic_rotate %5 by %c15_i32 dim 1 : vector<16x256xf32>, i32 -> vector<16x256xf32>
    %c2 = arith.constant 2 : index
    %c0_13 = arith.constant 0 : index
    %c0_14 = arith.constant 0 : index
    %20 = vector.load %arg2[%c2, %c0_13, %c0_14] : memref<9x16x256xf32, #tpu.memory_space<vmem>>, vector<1x16x256xf32>
    %21 = vector.shape_cast %20 : vector<1x16x256xf32> to vector<16x256xf32>
    %22 = arith.mulf %19, %21 : vector<16x256xf32>
    %23 = arith.addf %18, %22 : vector<16x256xf32>
    %c1_i32 = arith.constant 1 : i32
    %24 = tpu.dynamic_rotate %5 by %c1_i32 dim 1 : vector<16x256xf32>, i32 -> vector<16x256xf32>
    %c3 = arith.constant 3 : index
    %c0_15 = arith.constant 0 : index
    %c0_16 = arith.constant 0 : index
    %25 = vector.load %arg2[%c3, %c0_15, %c0_16] : memref<9x16x256xf32, #tpu.memory_space<vmem>>, vector<1x16x256xf32>
    %26 = vector.shape_cast %25 : vector<1x16x256xf32> to vector<16x256xf32>
    %27 = arith.mulf %24, %26 : vector<16x256xf32>
    %28 = arith.addf %23, %27 : vector<16x256xf32>
    %c255_i32 = arith.constant 255 : i32
    %29 = tpu.dynamic_rotate %5 by %c255_i32 dim 1 : vector<16x256xf32>, i32 -> vector<16x256xf32>
    %c5 = arith.constant 5 : index
    %c0_17 = arith.constant 0 : index
    %c0_18 = arith.constant 0 : index
    %30 = vector.load %arg2[%c5, %c0_17, %c0_18] : memref<9x16x256xf32, #tpu.memory_space<vmem>>, vector<1x16x256xf32>
    %31 = vector.shape_cast %30 : vector<1x16x256xf32> to vector<16x256xf32>
    %32 = arith.mulf %29, %31 : vector<16x256xf32>
    %33 = arith.addf %28, %32 : vector<16x256xf32>
    %c241_i32 = arith.constant 241 : i32
    %34 = tpu.dynamic_rotate %5 by %c241_i32 dim 1 : vector<16x256xf32>, i32 -> vector<16x256xf32>
    %c6 = arith.constant 6 : index
    %c0_19 = arith.constant 0 : index
    %c0_20 = arith.constant 0 : index
    %35 = vector.load %arg2[%c6, %c0_19, %c0_20] : memref<9x16x256xf32, #tpu.memory_space<vmem>>, vector<1x16x256xf32>
    %36 = vector.shape_cast %35 : vector<1x16x256xf32> to vector<16x256xf32>
    %37 = arith.mulf %34, %36 : vector<16x256xf32>
    %38 = arith.addf %33, %37 : vector<16x256xf32>
    %c240_i32 = arith.constant 240 : i32
    %39 = tpu.dynamic_rotate %5 by %c240_i32 dim 1 : vector<16x256xf32>, i32 -> vector<16x256xf32>
    %c7 = arith.constant 7 : index
    %c0_21 = arith.constant 0 : index
    %c0_22 = arith.constant 0 : index
    %40 = vector.load %arg2[%c7, %c0_21, %c0_22] : memref<9x16x256xf32, #tpu.memory_space<vmem>>, vector<1x16x256xf32>
    %41 = vector.shape_cast %40 : vector<1x16x256xf32> to vector<16x256xf32>
    %42 = arith.mulf %39, %41 : vector<16x256xf32>
    %43 = arith.addf %38, %42 : vector<16x256xf32>
    %c239_i32 = arith.constant 239 : i32
    %44 = tpu.dynamic_rotate %5 by %c239_i32 dim 1 : vector<16x256xf32>, i32 -> vector<16x256xf32>
    %c8 = arith.constant 8 : index
    %c0_23 = arith.constant 0 : index
    %c0_24 = arith.constant 0 : index
    %45 = vector.load %arg2[%c8, %c0_23, %c0_24] : memref<9x16x256xf32, #tpu.memory_space<vmem>>, vector<1x16x256xf32>
    %46 = vector.shape_cast %45 : vector<1x16x256xf32> to vector<16x256xf32>
    %47 = arith.mulf %44, %46 : vector<16x256xf32>
    %48 = arith.addf %43, %47 : vector<16x256xf32>
    %cst = arith.constant dense<0.000000e+00> : vector<32x256xf32>
    %49 = tpu.matmul %0, %48, %cst {dimension_numbers = #tpu.dot_dimension_numbers<[1], [0], [0], [1], [0, 0, 1, 1], [], []>} : vector<32x16xf32>, vector<16x256xf32>, vector<32x256xf32> -> vector<32x256xf32>
    %50 = arith.addf %49, %3 : vector<32x256xf32>
    %c0_25 = arith.constant 0 : index
    %c0_26 = arith.constant 0 : index
    %c0_27 = arith.constant 0 : index
    %51 = vector.load %arg5[%c0_25, %c0_26, %c0_27] : memref<1x32x256xf32, #tpu.memory_space<vmem>>, vector<1x32x256xf32>
    %52 = vector.shape_cast %51 : vector<1x32x256xf32> to vector<32x256xf32>
    %53 = vector.shape_cast %50 : vector<32x256xf32> to vector<1x32x256xf32>
    tpu.vector_store %arg5[%c0_25, %c0_26, %c0_27], %53 {strides = array<i32>} : memref<1x32x256xf32, #tpu.memory_space<vmem>>, vector<1x32x256xf32>,
    return
  }
  func.func @transform_0(%arg0: i32) -> (i32, i32, i32) {
    %c0_i32 = arith.constant 0 : i32
    %c0_i32_0 = arith.constant 0 : i32
    %c0_i32_1 = arith.constant 0 : i32
    return %arg0, %c0_i32, %c0_i32_0 : i32, i32, i32
  }
  func.func @transform_1(%arg0: i32) -> (i32, i32, i32) {
    %c0_i32 = arith.constant 0 : i32
    %c0_i32_0 = arith.constant 0 : i32
    %c0_i32_1 = arith.constant 0 : i32
    %c0_i32_2 = arith.constant 0 : i32
    return %c0_i32, %c0_i32_0, %c0_i32_1 : i32, i32, i32
  }
  func.func @transform_2(%arg0: i32) -> (i32, i32) {
    %c0_i32 = arith.constant 0 : i32
    %c0_i32_0 = arith.constant 0 : i32
    %c0_i32_1 = arith.constant 0 : i32
    return %c0_i32, %c0_i32_0 : i32, i32
  }
  func.func @transform_3(%arg0: i32) -> (i32, i32) {
    %c0_i32 = arith.constant 0 : i32
    %c0_i32_0 = arith.constant 0 : i32
    %c0_i32_1 = arith.constant 0 : i32
    return %c0_i32, %c0_i32_0 : i32, i32
  }
  func.func @transform_4(%arg0: i32) -> (i32, i32, i32) {
    %c0_i32 = arith.constant 0 : i32
    %c0_i32_0 = arith.constant 0 : i32
    %c0_i32_1 = arith.constant 0 : i32
    return %arg0, %c0_i32, %c0_i32_0 : i32, i32, i32
  }
}

</mosaic_0001>

<llo_original>
// kernel: mul.8
$region0: #{mul.8}
  %s0 = inlined_call_operand.hbm [shape: f32[3,3,16], index: 0, kind: input, shape index: {}]
  %s1 = inlined_call_operand.vmem [shape: f32[9,16], index: 1, kind: output, shape index: {}]
  $region1: #{mul.8} parent=0
    #allocation0 [shape = 'u8[6144]{0}', space=vmem, size = 0x1800, scoped, tag = 'operand span for operand 0']
    #allocation1 [shape = 's32[1]{0}', space=sflag, size = 0x4, scoped, tag = 'scoped memory for mul.8']
    #allocation2 [shape = 'u8[12288]{0}', space=vmem, size = 0x3000, scoped, tag = 'scoped mem for input reshape']
    %2 = vsyncpa [#allocation1], 0
    %s4 = ssub.s32 192, 192
    %5 = vsyncadd [#allocation1], %s4
    %s7 = sshll.u32 [#allocation0], 4
    %s8 = int_to_ptr.vmem [resolvable:$true] %s7
    %10 = dma.hbm_to_vmem [thread:$0]  %s0, 192, %s8, [#allocation1]
    %11 = dma.done [#allocation1], 192
    %s13 = sshll.u32 1, 4
    %s14 = ssub.s32 %s13, 1
    %s15 = smul.addr 4, 2
    %s16 = scalar_lea.vmem [#allocation0], %s15
    %v17 = vld [vmem:[%s16] sm:%s14]
    %s18 = scalar_lea.vmem [#allocation2], 16
    %19 = vst [vmem:[%s18] sm:%s14] %v17
    %s20 = scalar_lea.vmem [#allocation0], 4
    %v21 = vld [vmem:[%s20] sm:%s14]
    %s22 = scalar_lea.vmem [#allocation2], 8
    %23 = vst [vmem:[%s22] sm:%s14] %v21
    %v24 = vld [vmem:[#allocation0] sm:%s14]
    %25 = vst [vmem:[#allocation2] sm:%s14] %v24
    %v26 = vld [vmem:[#allocation2] sm:$0x7]
    %vm27 = vcmask 130048
    %28 = vst.msk [vmem:[%s1] sm:$0x7] %vm27, %v26
    %s29 = scalar_lea.vmem [#allocation2], 8
    %v30 = vld [vmem:[%s29] sm:$0x7]
    %vm31 = vcmask 130048
    %s32 = scalar_lea.vmem %s1, 3
    %33 = vst.msk [vmem:[%s32] sm:$0x7] %vm31, %v30
    %s34 = scalar_lea.vmem [#allocation2], 16
    %v35 = vld [vmem:[%s34] sm:$0x7]
    %vm36 = vcmask 130048
    %s37 = scalar_lea.vmem %s1, 6
    %38 = vst.msk [vmem:[%s37] sm:$0x7] %vm36, %v35
    %39 = vsyncpa [#allocation1], 1

// kernel: depthwise_conv_forward.1
$region0: #{depthwise_conv_forward.1}
  #allocation0 [shape = 'u32[]', space=smem, size = 0x4, offset = 0x4, fixed_abs, tag = 'smem constant byte address 0x4 - core index']
  #allocation1 [shape = 'u32[144,128]{1,0:T(1,128)}', space=vmem, size = 0x12000, scoped, tag = 'internal scratch']
  %s0 = inlined_call_operand.vmem [shape: f32[2,16,256], index: 0, kind: input, shape index: {}]
  %s1 = inlined_call_operand.vmem [shape: f32[9,16,256], index: 1, kind: input, shape index: {}]
  %s2 = inlined_call_operand.vmem [shape: f32[32,16], index: 2, kind: input, shape index: {}]
  %s3 = inlined_call_operand.vmem [shape: f32[32,1], index: 3, kind: input, shape index: {}]
  %s4 = inlined_call_operand.vmem [shape: f32[2,32,256], index: 4, kind: output, shape index: {}]
  %s5 = sld [smem:[#allocation0]]
  $region49: #{depthwise_conv_forward.1} parent=0
    _
  %s7 = ssub.s32 1, %s5
  %s8 = scalar_select 0, %s7, %s5
  loop: start=0, step=1, limit=4
  $region2: #{depthwise_conv_forward.1} parent=0 // loop_pre_header
    _
  $region3: #{depthwise_conv_forward.1} parent=0 // loop_header
    %s10 = sphi 0, %s14
    %p11 = scmp.ge.s32.totalorder %s10, 4
    %s20 = sphi 0, %s22
    %s23 = sphi 0, %s20
    %s24 = sphi 0, %s23
    %s40 = sphi 0, %s24
    %s44 = sphi 0, %s44
    %s46 = sphi 0, %s44
    %s47 = sphi 0, %s46
    %s61 = sphi 0, %s47
    %s65 = sphi 0, %s65
    %s67 = sphi 0, %s65
    %s68 = sphi 0, %s67
    %s82 = sphi 0, %s68
    %s86 = sphi 0, %s86
    %s88 = sphi 0, %s86
    %s89 = sphi 0, %s88
    %s103 = sphi 0, %s89
    %s109 = sphi 0, %s111
    %s112 = sphi 0, %s109
    %s113 = sphi 0, %s112
    %s129 = sphi 0, %s113
  $region4: #{depthwise_conv_forward.1} parent=0 // loop_header_branch
    %13 = sbr.rel (%p11) target = $region8
  $region5: #{depthwise_conv_forward.1} parent=0 // loop_body
    %s15 = ssub.s32 %s10, 1
    %s16 = ssub.s32 %s10, 2
    %s17 = sadd.s32 %s10, 1
    %s18 = ssub.s32 %s10, %s17
    %p19 = scmp.eq.s32.totalorder %s18, 0
    %s21 = sadd.s32 %s20, 1
    %s22 = scalar_select %p19, %s20, %s21
    %p25 = pneg %p19
    %p26 = scmp.eq.s32.totalorder %s10, 1
    %p27 = por %p25, %p26
    %p28 = scmp.ne.s32.totalorder %s20, %s23
    %p29 = scmp.eq.s32.totalorder %s10, 0
    %p30 = por %p28, %p29
    %p31 = scmp.ne.s32.totalorder %s20, %s23
    %p32 = scmp.eq.s32.totalorder %s15, 1
    %p33 = por %p31, %p32
    %p34 = scmp.ne.s32.totalorder %s23, %s24
    %p35 = scmp.eq.s32.totalorder %s15, 0
    %p36 = por %p34, %p35
    %p37 = scmp.ne.s32.totalorder %s23, %s24
    %p38 = scmp.eq.s32.totalorder %s16, 1
    %p39 = por %p37, %p38
    %p41 = scmp.ne.s32.totalorder %s24, %s40
    %p42 = scmp.eq.s32.totalorder %s16, 0
    %p43 = por %p41, %p42
    %s45 = sadd.s32 %s44, 1
    %p48 = scmp.eq.s32.totalorder %s10, 1
    %p49 = scmp.ne.s32.totalorder %s44, %s46
    %p50 = scmp.eq.s32.totalorder %s10, 0
    %p51 = por %p49, %p50
    %p52 = scmp.ne.s32.totalorder %s44, %s46
    %p53 = scmp.eq.s32.totalorder %s15, 1
    %p54 = por %p52, %p53
    %p55 = scmp.ne.s32.totalorder %s46, %s47
    %p56 = scmp.eq.s32.totalorder %s15, 0
    %p57 = por %p55, %p56
    %p58 = scmp.ne.s32.totalorder %s46, %s47
    %p59 = scmp.eq.s32.totalorder %s16, 1
    %p60 = por %p58, %p59
    %p62 = scmp.ne.s32.totalorder %s47, %s61
    %p63 = scmp.eq.s32.totalorder %s16, 0
    %p64 = por %p62, %p63
    %s66 = sadd.s32 %s65, 1
    %p69 = scmp.eq.s32.totalorder %s10, 1
    %p70 = scmp.ne.s32.totalorder %s65, %s67
    %p71 = scmp.eq.s32.totalorder %s10, 0
    %p72 = por %p70, %p71
    %p73 = scmp.ne.s32.totalorder %s65, %s67
    %p74 = scmp.eq.s32.totalorder %s15, 1
    %p75 = por %p73, %p74
    %p76 = scmp.ne.s32.totalorder %s67, %s68
    %p77 = scmp.eq.s32.totalorder %s15, 0
    %p78 = por %p76, %p77
    %p79 = scmp.ne.s32.totalorder %s67, %s68
    %p80 = scmp.eq.s32.totalorder %s16, 1
    %p81 = por %p79, %p80
    %p83 = scmp.ne.s32.totalorder %s68, %s82
    %p84 = scmp.eq.s32.totalorder %s16, 0
    %p85 = por %p83, %p84
    %s87 = sadd.s32 %s86, 1
    %p90 = scmp.eq.s32.totalorder %s10, 1
    %p91 = scmp.ne.s32.totalorder %s86, %s88
    %p92 = scmp.eq.s32.totalorder %s10, 0
    %p93 = por %p91, %p92
    %p94 = scmp.ne.s32.totalorder %s86, %s88
    %p95 = scmp.eq.s32.totalorder %s15, 1
    %p96 = por %p94, %p95
    %p97 = scmp.ne.s32.totalorder %s88, %s89
    %p98 = scmp.eq.s32.totalorder %s15, 0
    %p99 = por %p97, %p98
    %p100 = scmp.ne.s32.totalorder %s88, %s89
    %p101 = scmp.eq.s32.totalorder %s16, 1
    %p102 = por %p100, %p101
    %p104 = scmp.ne.s32.totalorder %s89, %s103
    %p105 = scmp.eq.s32.totalorder %s16, 0
    %p106 = por %p104, %p105
    %s107 = ssub.s32 %s10, %s17
    %p108 = scmp.eq.s32.totalorder %s107, 0
    %s110 = sadd.s32 %s109, 1
    %s111 = scalar_select %p108, %s109, %s110
    %p114 = pneg %p108
    %p115 = scmp.eq.s32.totalorder %s10, 1
    %p116 = por %p114, %p115
    %p117 = scmp.ne.s32.totalorder %s109, %s112
    %p118 = scmp.eq.s32.totalorder %s10, 0
    %p119 = por %p117, %p118
    %p120 = scmp.ne.s32.totalorder %s109, %s112
    %p121 = scmp.eq.s32.totalorder %s15, 1
    %p122 = por %p120, %p121
    %p123 = scmp.ne.s32.totalorder %s112, %s113
    %p124 = scmp.eq.s32.totalorder %s15, 0
    %p125 = por %p123, %p124
    %p126 = scmp.ne.s32.totalorder %s112, %s113
    %p127 = scmp.eq.s32.totalorder %s16, 1
    %p128 = por %p126, %p127
    %p130 = scmp.ne.s32.totalorder %s113, %s129
    %p131 = scmp.eq.s32.totalorder %s16, 0
    %p132 = por %p130, %p131
    %p133 = scmp.le.s32.totalorder 1, %s10
    %p134 = scmp.lt.s32.totalorder %s10, 3
    %p135 = pnand %p133, %p134
    %p136 = pneg %p135
    // Predicated region
    $region9: #{depthwise_conv_forward.1} parent=5 // pred_check
      _
    $region10: #{depthwise_conv_forward.1} parent=5 // pred_check_branch
      %138 = sbr.rel (%p135) target = $region12
    $region11: #{depthwise_conv_forward.1} parent=5 // pred_region
      %s139 = ssub.s32 %s10, 1
      // Predicated region
      $region13: #{depthwise_conv_forward.1} parent=11 // pred_check
        %p140 = pneg %p57
      $region14: #{depthwise_conv_forward.1} parent=11 // pred_check_branch
        %142 = sbr.rel (%p140) target = $region16
      $region15: #{depthwise_conv_forward.1} parent=11 // pred_region
        _
      $region16: #{depthwise_conv_forward.1} parent=11 // pred_fallthru
        _
      // Predicated region
      $region17: #{depthwise_conv_forward.1} parent=11 // pred_check
        %p143 = pneg %p78
      $region18: #{depthwise_conv_forward.1} parent=11 // pred_check_branch
        %145 = sbr.rel (%p143) target = $region20
      $region19: #{depthwise_conv_forward.1} parent=11 // pred_region
        _
      $region20: #{depthwise_conv_forward.1} parent=11 // pred_fallthru
        _
      // Predicated region
      $region21: #{depthwise_conv_forward.1} parent=11 // pred_check
        %p146 = pneg %p99
      $region22: #{depthwise_conv_forward.1} parent=11 // pred_check_branch
        %148 = sbr.rel (%p146) target = $region24
      $region23: #{depthwise_conv_forward.1} parent=11 // pred_region
        _
      $region24: #{depthwise_conv_forward.1} parent=11 // pred_fallthru
        _
    $region12: #{depthwise_conv_forward.1} parent=5 // pred_fallthru
      _
    %p149 = scmp.lt.s32.totalorder %s10, 2
    // Predicated region
    $region25: #{depthwise_conv_forward.1} parent=5 // pred_check
      %p150 = pneg %p149
    $region26: #{depthwise_conv_forward.1} parent=5 // pred_check_branch
      %152 = sbr.rel (%p150) target = $region28
    $region27: #{depthwise_conv_forward.1} parent=5 // pred_region
      // Predicated region
      $region29: #{depthwise_conv_forward.1} parent=27 // pred_check
        %p153 = pneg %p30
      $region30: #{depthwise_conv_forward.1} parent=27 // pred_check_branch
        %155 = sbr.rel (%p153) target = $region32
      $region31: #{depthwise_conv_forward.1} parent=27 // pred_region
        %p156 = scmp.lt.s32.totalorder %s10, 1
        %s157 = scalar_select %p156, %s10, 1
        %s158 = smul.addr %s157, 4
        %s159 = smul.addr %s158, 8
        %s160 = scalar_lea.vmem %s0, %s159
      $region32: #{depthwise_conv_forward.1} parent=27 // pred_fallthru
        _
    $region28: #{depthwise_conv_forward.1} parent=5 // pred_fallthru
      _
    %p161 = scmp.le.s32.totalorder 1, %s10
    %p162 = scmp.lt.s32.totalorder %s10, 3
    %p163 = pnand %p161, %p162
    %p164 = pneg %p163
    // Predicated region
    $region33: #{depthwise_conv_forward.1} parent=5 // pred_check
      _
    $region34: #{depthwise_conv_forward.1} parent=5 // pred_check_branch
      %166 = sbr.rel (%p163) target = $region36
    $region35: #{depthwise_conv_forward.1} parent=5 // pred_region
      %s167 = ssub.s32 %s10, 1
      %p168 = scmp.lt.s32.totalorder %s15, 1
      %s169 = scalar_select %p168, %s15, 1
      %s170 = smul.addr %s169, 4
      %s171 = smul.addr %s170, 8
      %s172 = scalar_lea.vmem %s0, %s171
      %p173 = pneg %p36
      %p174 = pneg %p33
      %p175 = pneg %p57
      %p176 = pneg %p54
      %p177 = pneg %p78
      %p178 = pneg %p75
      %p179 = pneg %p99
      %p180 = pneg %p96
      %p181 = pneg %p125
      %p182 = pneg %p122
      %p183 = scmp.lt.s32.totalorder %s15, 1
      %s184 = scalar_select %p183, %s15, 1
      %s185 = smul.addr %s184, 8
      %s186 = smul.addr %s185, 8
      %s187 = scalar_lea.vmem %s4, %s186
      %p188 = scmp.lt.s32.totalorder %s15, 1
      %s189 = scalar_select %p188, %s15, 1
      %s190 = smul.addr %s189, 4
      %s191 = smul.addr %s190, 8
      %s192 = scalar_lea.vmem %s0, %s191
      %p193 = scmp.lt.s32.totalorder %s15, 1
      %s194 = scalar_select %p193, %s15, 1
      %s195 = smul.addr %s194, 8
      %s196 = smul.addr %s195, 8
      %s197 = scalar_lea.vmem %s4, %s196
      %v198 = vld [vmem:[%s2] sm:$0xff]
      %v199 = vld [vmem:[%s2 + $0x8] sm:$0xff]
      %v200 = vld [vmem:[%s2 + $0x10] sm:$0xff]
      %v201 = vld [vmem:[%s2 + $0x18] sm:$0xff]
      %v202 = vld [vmem:[%s3] sm:$0xff]
      %v203 = vld [vmem:[%s3 + $0x8] sm:$0xff]
      %v204 = vld [vmem:[%s3 + $0x10] sm:$0xff]
      %v205 = vld [vmem:[%s3 + $0x18] sm:$0xff]
      %207 = vset.pattern.permute.xlu0 0
      %208 = vperm.xlu0 %207, %v202
      %v209 = vpop.permute.xlu0 %208
      %212 = vset.pattern.permute.xlu0 0
      %213 = vperm.xlu0 %212, %v203
      %v214 = vpop.permute.xlu0 %213
      %217 = vset.pattern.permute.xlu0 0
      %218 = vperm.xlu0 %217, %v204
      %v219 = vpop.permute.xlu0 %218
      %222 = vset.pattern.permute.xlu0 0
      %223 = vperm.xlu0 %222, %v205
      %v224 = vpop.permute.xlu0 %223
      %v226 = vld [vmem:[%s192] sm:$0xff]
      %v227 = vld [vmem:[%s192 + $0x8] sm:$0xff]
      %v228 = vld [vmem:[%s192 + $0x10] sm:$0xff]
      %v229 = vld [vmem:[%s192 + $0x18] sm:$0xff]
      %s230 = scalar_lea.vmem %s1, 128
      %v231 = vld [vmem:[%s230] sm:$0xff]
      %v232 = vld [vmem:[%s230 + $0x8] sm:$0xff]
      %v233 = vld [vmem:[%s230 + $0x10] sm:$0xff]
      %v234 = vld [vmem:[%s230 + $0x18] sm:$0xff]
      %v235 = vmul.f32 %v226, %v231
      %v236 = vmul.f32 %v227, %v232
      %v237 = vmul.f32 %v228, %v233
      %v238 = vmul.f32 %v229, %v234
      %239 = vrot.lane.b32.xlu0 %v226, 17
      %v240 = vpop.permute.xlu0 %239
      %241 = vrot.lane.b32.xlu0 %v228, 17
      %v242 = vpop.permute.xlu0 %241
      %243 = vrot.lane.b32.xlu0 %v227, 17
      %v244 = vpop.permute.xlu0 %243
      %245 = vrot.lane.b32.xlu0 %v229, 17
      %v246 = vpop.permute.xlu0 %245
      %v247 = vlaneseq
      %v248 = vand.u32 %v247, 127
      %vm249 = vcmp.lt.s32.totalorder %v248, 17
      %v250 = vsel %vm249, %v240, %v244
      %v251 = vsel %vm249, %v242, %v246
      %v252 = vsel %vm249, %v244, %v240
      %v253 = vsel %vm249, %v246, %v242
      %v254 = vld [vmem:[%s1] sm:$0xff]
      %v255 = vld [vmem:[%s1 + $0x8] sm:$0xff]
      %v256 = vld [vmem:[%s1 + $0x10] sm:$0xff]
      %v257 = vld [vmem:[%s1 + $0x18] sm:$0xff]
      %v258 = vmul.f32 %v252, %v254
      %v259 = vmul.f32 %v250, %v255
      %v260 = vmul.f32 %v253, %v256
      %v261 = vmul.f32 %v251, %v257
      %v262 = vadd.f32 %v235, %v258
      %v263 = vadd.f32 %v236, %v259
      %v264 = vadd.f32 %v237, %v260
      %v265 = vadd.f32 %v238, %v261
      %266 = vrot.lane.b32.xlu0 %v226, 16
      %v267 = vpop.permute.xlu0 %266
      %268 = vrot.lane.b32.xlu0 %v228, 16
      %v269 = vpop.permute.xlu0 %268
      %270 = vrot.lane.b32.xlu0 %v227, 16
      %v271 = vpop.permute.xlu0 %270
      %272 = vrot.lane.b32.xlu0 %v229, 16
      %v273 = vpop.permute.xlu0 %272
      %vm274 = vcmp.lt.s32.totalorder %v248, 16
      %v275 = vsel %vm274, %v267, %v271
      %v276 = vsel %vm274, %v269, %v273
      %v277 = vsel %vm274, %v271, %v267
      %v278 = vsel %vm274, %v273, %v269
      %s279 = scalar_lea.vmem %s1, 32
      %v280 = vld [vmem:[%s279] sm:$0xff]
      %v281 = vld [vmem:[%s279 + $0x8] sm:$0xff]
      %v282 = vld [vmem:[%s279 + $0x10] sm:$0xff]
      %v283 = vld [vmem:[%s279 + $0x18] sm:$0xff]
      %v284 = vmul.f32 %v277, %v280
      %v285 = vmul.f32 %v275, %v281
      %v286 = vmul.f32 %v278, %v282
      %v287 = vmul.f32 %v276, %v283
      %v288 = vadd.f32 %v262, %v284
      %v289 = vadd.f32 %v263, %v285
      %v290 = vadd.f32 %v264, %v286
      %v291 = vadd.f32 %v265, %v287
      %292 = vrot.lane.b32.xlu0 %v226, 15
      %v293 = vpop.permute.xlu0 %292
      %294 = vrot.lane.b32.xlu0 %v228, 15
      %v295 = vpop.permute.xlu0 %294
      %296 = vrot.lane.b32.xlu0 %v227, 15
      %v297 = vpop.permute.xlu0 %296
      %298 = vrot.lane.b32.xlu0 %v229, 15
      %v299 = vpop.permute.xlu0 %298
      %vm300 = vcmp.lt.s32.totalorder %v248, 15
      %v301 = vsel %vm300, %v293, %v297
      %v302 = vsel %vm300, %v295, %v299
      %v303 = vsel %vm300, %v297, %v293
      %v304 = vsel %vm300, %v299, %v295
      %s305 = scalar_lea.vmem %s1, 64
      %v306 = vld [vmem:[%s305] sm:$0xff]
      %v307 = vld [vmem:[%s305 + $0x8] sm:$0xff]
      %v308 = vld [vmem:[%s305 + $0x10] sm:$0xff]
      %v309 = vld [vmem:[%s305 + $0x18] sm:$0xff]
      %v310 = vmul.f32 %v303, %v306
      %v311 = vmul.f32 %v301, %v307
      %v312 = vmul.f32 %v304, %v308
      %v313 = vmul.f32 %v302, %v309
      %v314 = vadd.f32 %v288, %v310
      %v315 = vadd.f32 %v289, %v311
      %v316 = vadd.f32 %v290, %v312
      %v317 = vadd.f32 %v291, %v313
      %318 = vrot.lane.b32.xlu0 %v226, 1
      %v319 = vpop.permute.xlu0 %318
      %320 = vrot.lane.b32.xlu0 %v228, 1
      %v321 = vpop.permute.xlu0 %320
      %322 = vrot.lane.b32.xlu0 %v227, 1
      %v323 = vpop.permute.xlu0 %322
      %324 = vrot.lane.b32.xlu0 %v229, 1
      %v325 = vpop.permute.xlu0 %324
      %vm326 = vcmp.lt.s32.totalorder %v248, 1
      %v327 = vsel %vm326, %v319, %v323
      %v328 = vsel %vm326, %v321, %v325
      %v329 = vsel %vm326, %v323, %v319
      %v330 = vsel %vm326, %v325, %v321
      %s331 = scalar_lea.vmem %s1, 96
      %v332 = vld [vmem:[%s331] sm:$0xff]
      %v333 = vld [vmem:[%s331 + $0x8] sm:$0xff]
      %v334 = vld [vmem:[%s331 + $0x10] sm:$0xff]
      %v335 = vld [vmem:[%s331 + $0x18] sm:$0xff]
      %v336 = vmul.f32 %v329, %v332
      %v337 = vmul.f32 %v327, %v333
      %v338 = vmul.f32 %v330, %v334
      %v339 = vmul.f32 %v328, %v335
      %v340 = vadd.f32 %v314, %v336
      %v341 = vadd.f32 %v315, %v337
      %v342 = vadd.f32 %v316, %v338
      %v343 = vadd.f32 %v317, %v339
      %344 = vrot.lane.b32.xlu0 %v226, 127
      %v345 = vpop.permute.xlu0 %344
      %346 = vrot.lane.b32.xlu0 %v228, 127
      %v347 = vpop.permute.xlu0 %346
      %348 = vrot.lane.b32.xlu0 %v227, 127
      %v349 = vpop.permute.xlu0 %348
      %350 = vrot.lane.b32.xlu0 %v229, 127
      %v351 = vpop.permute.xlu0 %350
      %vm352 = vcmp.lt.s32.totalorder %v248, 127
      %v353 = vsel %vm352, %v345, %v349
      %v354 = vsel %vm352, %v347, %v351
      %v355 = vsel %vm352, %v349, %v345
      %v356 = vsel %vm352, %v351, %v347
      %s357 = scalar_lea.vmem %s1, 160
      %v358 = vld [vmem:[%s357] sm:$0xff]
      %v359 = vld [vmem:[%s357 + $0x8] sm:$0xff]
      %v360 = vld [vmem:[%s357 + $0x10] sm:$0xff]
      %v361 = vld [vmem:[%s357 + $0x18] sm:$0xff]
      %v362 = vmul.f32 %v353, %v358
      %v363 = vmul.f32 %v355, %v359
      %v364 = vmul.f32 %v354, %v360
      %v365 = vmul.f32 %v356, %v361
      %v366 = vadd.f32 %v340, %v362
      %v367 = vadd.f32 %v341, %v363
      %v368 = vadd.f32 %v342, %v364
      %v369 = vadd.f32 %v343, %v365
      %370 = vrot.lane.b32.xlu0 %v226, 113
      %v371 = vpop.permute.xlu0 %370
      %372 = vrot.lane.b32.xlu0 %v228, 113
      %v373 = vpop.permute.xlu0 %372
      %374 = vrot.lane.b32.xlu0 %v227, 113
      %v375 = vpop.permute.xlu0 %374
      %376 = vrot.lane.b32.xlu0 %v229, 113
      %v377 = vpop.permute.xlu0 %376
      %vm378 = vcmp.lt.s32.totalorder %v248, 113
      %v379 = vsel %vm378, %v371, %v375
      %v380 = vsel %vm378, %v373, %v377
      %v381 = vsel %vm378, %v375, %v371
      %v382 = vsel %vm378, %v377, %v373
      %s383 = scalar_lea.vmem %s1, 192
      %v384 = vld [vmem:[%s383] sm:$0xff]
      %v385 = vld [vmem:[%s383 + $0x8] sm:$0xff]
      %v386 = vld [vmem:[%s383 + $0x10] sm:$0xff]
      %v387 = vld [vmem:[%s383 + $0x18] sm:$0xff]
      %v388 = vmul.f32 %v379, %v384
      %v389 = vmul.f32 %v381, %v385
      %v390 = vmul.f32 %v380, %v386
      %v391 = vmul.f32 %v382, %v387
      %v392 = vadd.f32 %v366, %v388
      %v393 = vadd.f32 %v367, %v389
      %v394 = vadd.f32 %v368, %v390
      %v395 = vadd.f32 %v369, %v391
      %396 = vrot.lane.b32.xlu0 %v226, 112
      %v397 = vpop.permute.xlu0 %396
      %398 = vrot.lane.b32.xlu0 %v228, 112
      %v399 = vpop.permute.xlu0 %398
      %400 = vrot.lane.b32.xlu0 %v227, 112
      %v401 = vpop.permute.xlu0 %400
      %402 = vrot.lane.b32.xlu0 %v229, 112
      %v403 = vpop.permute.xlu0 %402
      %vm404 = vcmp.lt.s32.totalorder %v248, 112
      %v405 = vsel %vm404, %v397, %v401
      %v406 = vsel %vm404, %v399, %v403
      %v407 = vsel %vm404, %v401, %v397
      %v408 = vsel %vm404, %v403, %v399
      %s409 = scalar_lea.vmem %s1, 224
      %v410 = vld [vmem:[%s409] sm:$0xff]
      %v411 = vld [vmem:[%s409 + $0x8] sm:$0xff]
      %v412 = vld [vmem:[%s409 + $0x10] sm:$0xff]
      %v413 = vld [vmem:[%s409 + $0x18] sm:$0xff]
      %v414 = vmul.f32 %v405, %v410
      %v415 = vmul.f32 %v407, %v411
      %v416 = vmul.f32 %v406, %v412
      %v417 = vmul.f32 %v408, %v413
      %v418 = vadd.f32 %v392, %v414
      %v419 = vadd.f32 %v393, %v415
      %v420 = vadd.f32 %v394, %v416
      %v421 = vadd.f32 %v395, %v417
      %422 = vrot.lane.b32.xlu0 %v226, 111
      %v423 = vpop.permute.xlu0 %422
      %424 = vrot.lane.b32.xlu0 %v228, 111
      %v425 = vpop.permute.xlu0 %424
      %426 = vrot.lane.b32.xlu0 %v227, 111
      %v427 = vpop.permute.xlu0 %426
      %428 = vrot.lane.b32.xlu0 %v229, 111
      %v429 = vpop.permute.xlu0 %428
      %vm430 = vcmp.lt.s32.totalorder %v248, 111
      %v431 = vsel %vm430, %v423, %v427
      %v432 = vsel %vm430, %v425, %v429
      %v433 = vsel %vm430, %v427, %v423
      %v434 = vsel %vm430, %v429, %v425
      %s435 = scalar_lea.vmem %s1, 256
      %v436 = vld [vmem:[%s435] sm:$0xff]
      %v437 = vld [vmem:[%s435 + $0x8] sm:$0xff]
      %v438 = vld [vmem:[%s435 + $0x10] sm:$0xff]
      %v439 = vld [vmem:[%s435 + $0x18] sm:$0xff]
      %v440 = vmul.f32 %v431, %v436
      %v441 = vmul.f32 %v433, %v437
      %v442 = vmul.f32 %v432, %v438
      %v443 = vmul.f32 %v434, %v439
      %v444 = vadd.f32 %v418, %v440
      %v445 = vadd.f32 %v419, %v441
      %v446 = vadd.f32 %v420, %v442
      %v447 = vadd.f32 %v421, %v443
      %vm448 = vcmask 130048
      %v450 = vsel %vm448, %v198, 0
      %v453 = vsel %vm448, %v199, 0
      %v456 = vsel %vm448, %v200, 0
      %v459 = vsel %vm448, %v201, 0
      %461 = vmatprep.subr.mxu0 0.0
      %462 = vmatpush1.msra.mxu0 0.0
      %463 = vmatprep.subr.mxu0 0.0
      %464 = vmatpush1.msra.mxu0 0.0
      %465 = vmatprep.subr.mxu0 0.0
      %466 = vmatpush1.msra.mxu0 0.0
      %467 = vmatprep.subr.mxu0 0.0
      %468 = vmatpush1.msra.mxu0 0.0
      %469 = vmatprep.subr.mxu0 0.0
      %470 = vmatpush1.msra.mxu0 0.0
      %471 = vmatprep.subr.mxu0 0.0
      %472 = vmatpush1.msra.mxu0 0.0
      %473 = vmatprep.subr.mxu0 0.0
      %474 = vmatpush1.msra.mxu0 0.0
      %475 = vmatprep.subr.mxu0 0.0
      %476 = vmatpush1.msra.mxu0 0.0
      %477 = vmatprep.subr.mxu0 0.0
      %478 = vmatpush1.msra.mxu0 0.0
      %479 = vmatprep.subr.mxu0 0.0
      %480 = vmatpush1.msra.mxu0 0.0
      %481 = vmatprep.subr.mxu0 0.0
      %482 = vmatpush1.msra.mxu0 0.0
      %483 = vmatprep.subr.mxu0 0.0
      %484 = vmatpush1.msra.mxu0 0.0
      %485 = vmatprep.subr.mxu0 0.0
      %486 = vmatpush1.msra.mxu0 0.0
      %487 = vmatprep.subr.mxu0 0.0
      %488 = vmatpush1.msra.mxu0 0.0
      %489 = vmatprep.subr.mxu0 %v447
      %490 = vmatpush1.msra.mxu0 %v446
      %491 = vmatprep.subr.mxu0 %v445
      %492 = vmatpush1.msra.mxu0 %v444
      %493 = vmatprep.subr.mxu0 0.0
      %494 = vmatpush2.msra.mxu0 0.0
      %495 = vmatprep.subr.mxu0 0.0
      %496 = vmatpush2.msra.mxu0 0.0
      %497 = vmatprep.subr.mxu0 0.0
      %498 = vmatpush2.msra.mxu0 0.0
      %499 = vmatprep.subr.mxu0 0.0
      %500 = vmatpush2.msra.mxu0 0.0
      %501 = vmatprep.subr.mxu0 0.0
      %502 = vmatpush2.msra.mxu0 0.0
      %503 = vmatprep.subr.mxu0 0.0
      %504 = vmatpush2.msra.mxu0 0.0
      %505 = vmatprep.subr.mxu0 0.0
      %506 = vmatpush2.msra.mxu0 0.0
      %507 = vmatprep.subr.mxu0 0.0
      %508 = vmatpush2.msra.mxu0 0.0
      %509 = vmatprep.subr.mxu0 0.0
      %510 = vmatpush2.msra.mxu0 0.0
      %511 = vmatprep.subr.mxu0 0.0
      %512 = vmatpush2.msra.mxu0 0.0
      %513 = vmatprep.subr.mxu0 0.0
      %514 = vmatpush2.msra.mxu0 0.0
      %515 = vmatprep.subr.mxu0 0.0
      %516 = vmatpush2.msra.mxu0 0.0
      %517 = vmatprep.subr.mxu0 0.0
      %518 = vmatpush2.msra.mxu0 0.0
      %519 = vmatprep.subr.mxu0 0.0
      %520 = vmatpush2.msra.mxu0 0.0
      %521 = vmatprep.subr.mxu0 0.0
      %522 = vmatpush2.msra.mxu0 0.0
      %523 = vmatprep.subr.mxu0 0.0
      %524 = vmatpush2.msra.mxu0 0.0
      %525 = vmatprep.mubr.f32.mxu0 0.0
      %526 = vmatmul.mubr.f32.gmra.mxu0 %v450
      %v527 = vpop.f32.mrf.mxu0
      %v528 = vadd.f32 %v209, %v527
      %v529 = vpop.f32.mrf.mxu0
      %v530 = vadd.f32 %v209, %v529
      %531 = vmatprep.mubr.f32.mxu0 0.0
      %532 = vmatmul.mubr.f32.gmra.mxu0 %v453
      %v533 = vpop.f32.mrf.mxu0
      %v534 = vadd.f32 %v214, %v533
      %v535 = vpop.f32.mrf.mxu0
      %v536 = vadd.f32 %v214, %v535
      %537 = vmatprep.mubr.f32.mxu0 0.0
      %538 = vmatmul.mubr.f32.gmra.mxu0 %v456
      %v539 = vpop.f32.mrf.mxu0
      %v540 = vadd.f32 %v219, %v539
      %v541 = vpop.f32.mrf.mxu0
      %v542 = vadd.f32 %v219, %v541
      %543 = vmatprep.mubr.f32.mxu0 0.0
      %544 = vmatmul.mubr.f32.gmra.mxu0 %v459
      %v545 = vpop.f32.mrf.mxu0
      %v546 = vadd.f32 %v224, %v545
      %v547 = vpop.f32.mrf.mxu0
      %v548 = vadd.f32 %v224, %v547
      %549 = vdwg.mxu0
      %550 = vst [vmem:[%s197] sm:$0xff] %v528
      %551 = vst [vmem:[%s197 + $0x8] sm:$0xff] %v530
      %552 = vst [vmem:[%s197 + $0x10] sm:$0xff] %v534
      %553 = vst [vmem:[%s197 + $0x18] sm:$0xff] %v536
      %554 = vst [vmem:[%s197 + $0x20] sm:$0xff] %v540
      %555 = vst [vmem:[%s197 + $0x28] sm:$0xff] %v542
      %556 = vst [vmem:[%s197 + $0x30] sm:$0xff] %v546
      %557 = vst [vmem:[%s197 + $0x38] sm:$0xff] %v548
      %p558 = scmp.lt.s32.totalorder %s15, 1
      %s559 = scalar_select %p558, %s15, 1
      %s560 = smul.addr %s559, 8
      %s561 = smul.addr %s560, 8
      %s562 = scalar_lea.vmem %s4, %s561
      // Predicated region
      $region37: #{depthwise_conv_forward.1} parent=35 // pred_check
        %p563 = pneg %p122
      $region38: #{depthwise_conv_forward.1} parent=35 // pred_check_branch
        %565 = sbr.rel (%p563) target = $region40
      $region39: #{depthwise_conv_forward.1} parent=35 // pred_region
        _
      $region40: #{depthwise_conv_forward.1} parent=35 // pred_fallthru
        _
    $region36: #{depthwise_conv_forward.1} parent=5 // pred_fallthru
      _
    %p566 = scmp.le.s32.totalorder 2, %s10
    // Predicated region
    $region41: #{depthwise_conv_forward.1} parent=5 // pred_check
      %p567 = pneg %p566
    $region42: #{depthwise_conv_forward.1} parent=5 // pred_check_branch
      %569 = sbr.rel (%p567) target = $region44
    $region43: #{depthwise_conv_forward.1} parent=5 // pred_region
      %s570 = ssub.s32 %s10, 2
      // Predicated region
      $region45: #{depthwise_conv_forward.1} parent=43 // pred_check
        %p571 = pneg %p128
      $region46: #{depthwise_conv_forward.1} parent=43 // pred_check_branch
        %573 = sbr.rel (%p571) target = $region48
      $region47: #{depthwise_conv_forward.1} parent=43 // pred_region
        %p574 = scmp.lt.s32.totalorder %s16, 1
        %s575 = scalar_select %p574, %s16, 1
        %s576 = smul.addr %s575, 8
        %s577 = smul.addr %s576, 8
        %s578 = scalar_lea.vmem %s4, %s577
      $region48: #{depthwise_conv_forward.1} parent=43 // pred_fallthru
        _
    $region44: #{depthwise_conv_forward.1} parent=5 // pred_fallthru
      _
  $region6: #{depthwise_conv_forward.1} parent=0 // loop_footer
    %s14 = sadd.s32 1, %s10
  $region7: #{depthwise_conv_forward.1} parent=0 // loop_footer_branch
    %9 = sbr.rel target = $region3
  $region8: #{depthwise_conv_forward.1} parent=0 // loop_exit
    _

</llo_original>
